<compile_context>
chip_gen: v6e
topology: v6e:2x2x1
jax: 0.10.0
libtpu: 0.0.40
codegen_flags: <defaults>
</compile_context>

<pallas_src>
import jax
import jax.numpy as jnp
import numpy as np
from jax.experimental import pallas as pl
from jax.experimental.pallas import tpu as pltpu


def _round_up(n, m):
    return ((n + m - 1) // m) * m


def dct_matrix(n):
    """Orthonormal DCT-II matrix D s.t. dct(v, norm='ortho') == D @ v."""
    k = np.arange(n, dtype=np.float64)[:, None]
    i = np.arange(n, dtype=np.float64)[None, :]
    d = np.cos(np.pi * (2.0 * i + 1.0) * k / (2.0 * n))
    scale = np.where(k == 0, np.sqrt(1.0 / n), np.sqrt(2.0 / n))
    return jnp.asarray(d * scale, dtype=jnp.float32)


def _row_tiling(M):
    """Row padding / tile size: >= 2 grid steps (megacore + pipelining), tile <= 256 rows."""
    TM_MAX = 256
    M32 = _round_up(max(M, 1), 32)
    if M32 <= 2 * TM_MAX:
        Mp = M32
        tm = Mp // 2          # always >= 16 and a divisor of Mp
    else:
        tm = TM_MAX
        Mp = _round_up(M, tm)
    return Mp, tm


def prepare_mwt_operators(params, B, C, L, keep_size=0.5, keep_size2=0.5,
                          compute_dtype=jnp.bfloat16):
    """One-time parameter-only precompute (hoisted out of the per-call forward).

    Folds DCT / truncated Linear / iDCT into:
        o1 = X A1 + u1 v1^T
        o2 = E2 (E2^T X A2 + 1 v2^T)        P2 = E2 E2^T, rank r2 = B*keep_C
        o3 = E3 (E3^T X A3 + 1 v3^T)        rank r3 = B*int(keep_C*keep_size2)
    with X = x.reshape(B*C, L), A_k = D_L^T W_kp^T D_L, v_k = D_L^T b_kp, u1 = D_M^T 1.
    """
    W1, b1, W2, b2, W3, b3 = params
    f32 = jnp.float32
    keep_L = int(L * keep_size)
    keep_C = int(C * keep_size)
    kL2 = int(keep_L * keep_size2)
    kC2 = int(keep_C * keep_size2)
    M = B * C
    Mp, _ = _row_tiling(M)

    dl = dct_matrix(L)                      # (L, L)
    dm = dct_matrix(M)                      # (M, M)

    # L-side composed operators (unpadded; only used in the XLA prologue).
    w1t = W1.T.astype(f32)
    w2t = jnp.zeros((L, L), f32).at[:keep_L, :keep_L].set(W2.T.astype(f32))
    w3t = jnp.zeros((L, L), f32).at[:kL2, :kL2].set(W3.T.astype(f32))
    a1 = dl.T @ w1t @ dl
    a2 = dl.T @ w2t @ dl
    a3 = dl.T @ w3t @ dl

    # Bias rank-1 factors.
    b2p = jnp.zeros((L,), f32).at[:keep_L].set(b2.astype(f32))
    b3p = jnp.zeros((L,), f32).at[:kL2].set(b3.astype(f32))
    v1 = dl.T @ b1.astype(f32)
    v2 = dl.T @ b2p
    v3 = dl.T @ b3p
    u1 = dm.T @ jnp.ones((M,), f32)

    # Low-rank channel-mask factors E_k = (D_M^T)[:, kept rows].
    cidx = np.arange(M) % C
    idx2 = np.nonzero(cidx < keep_C)[0]
    idx3 = np.nonzero(cidx < kC2)[0]
    r2, r3 = int(idx2.size), int(idx3.size)
    e2f = dm[idx2, :].T                     # (M, r2) f32, used in XLA prologue
    e3f = dm[idx3, :].T                     # (M, r3)

    # Padded bf16 copies streamed by the kernel (rows -> Mp, rank -> multiple of 16).
    r2p = max(_round_up(max(r2, 1), 16), 16)
    r3p = max(_round_up(max(r3, 1), 16), 16)
    e2p = jnp.zeros((Mp, r2p), f32).at[:M, :r2].set(e2f).astype(compute_dtype)
    e3p = jnp.zeros((Mp, r3p), f32).at[:M, :r3].set(e3f).astype(compute_dtype)

    return dict(a1=a1, a2=a2, a3=a3, e2f=e2f, e3f=e3f, e2p=e2p, e3p=e3p,
                u1=u1, v1=v1, v2=v2, v3=v3)


def _mwt_kernel(y1_ref, e2_ref, e3_ref, z2_ref, z3_ref, o_ref):
    """Per row-tile: o = [ Y1'_tile | E2_tile @ Z2' | E3_tile @ Z3' ] (lane-dense slab)."""
    Lp = y1_ref.shape[1]
    o2 = jnp.dot(e2_ref[...], z2_ref[...], preferred_element_type=jnp.float32)
    o3 = jnp.dot(e3_ref[...], z3_ref[...], preferred_element_type=jnp.float32)
    o_ref[:, 0 * Lp:1 * Lp] = y1_ref[...].astype(o_ref.dtype)
    o_ref[:, 1 * Lp:2 * Lp] = o2.astype(o_ref.dtype)
    o_ref[:, 2 * Lp:3 * Lp] = o3.astype(o_ref.dtype)


@jax.jit
def multiwavelet_transform(x, ops):
    """Pallas implementation of MultiWaveletTransform.forward. x: (B, C, L)."""
    B, C, L = x.shape
    M = B * C
    f32 = jnp.float32
    Lp = _round_up(L, 128)
    Mp, tm = _row_tiling(M)
    grid_m = Mp // tm

    a1, a2, a3 = ops["a1"], ops["a2"], ops["a3"]
    e2f, e3f = ops["e2f"], ops["e3f"]
    e2p, e3p = ops["e2p"], ops["e3p"]
    u1, v1, v2, v3 = ops["u1"], ops["v1"], ops["v2"], ops["v3"]
    r2p, r3p = e2p.shape[1], e3p.shape[1]
    cdt = e2p.dtype

    x_flat = x.reshape(M, L).astype(f32)

    # --- XLA prologue: one full-shape matmul per branch, biases folded in (f32) ---
    y1 = x_flat @ a1 + u1[:, None] * v1[None, :]          # (M, L)  branch 1, f32 end-to-end
    z2 = (e2f.T @ x_flat) @ a2 + v2[None, :]              # (r2, L) low-rank image of branch 2
    z3 = (e3f.T @ x_flat) @ a3 + v3[None, :]              # (r3, L)

    y1p = jnp.zeros((Mp, Lp), f32).at[:M, :L].set(y1)
    z2p = jnp.zeros((r2p, Lp), f32).at[:z2.shape[0], :L].set(z2).astype(cdt)
    z3p = jnp.zeros((r3p, Lp), f32).at[:z3.shape[0], :L].set(z3).astype(cdt)

    out_full = pl.pallas_call(
        _mwt_kernel,
        grid=(grid_m,),
        in_specs=[
            pl.BlockSpec((tm, Lp), lambda i: (i, 0)),      # Y1' row tile (streamed, f32)
            pl.BlockSpec((tm, r2p), lambda i: (i, 0)),     # E2 row tile (streamed, bf16)
            pl.BlockSpec((tm, r3p), lambda i: (i, 0)),     # E3 row tile (streamed, bf16)
            pl.BlockSpec((r2p, Lp), lambda i: (0, 0)),     # Z2' (resident, fetched once)
            pl.BlockSpec((r3p, Lp), lambda i: (0, 0)),     # Z3' (resident, fetched once)
        ],
        out_specs=pl.BlockSpec((tm, 3 * Lp), lambda i: (i, 0)),
        out_shape=jax.ShapeDtypeStruct((Mp, 3 * Lp), x.dtype),
        compiler_params=pltpu.CompilerParams(
            dimension_semantics=("parallel",),
            vmem_limit_bytes=48 * 1024 * 1024),
    )(y1p, e2p, e3p, z2p, z3p)

    # Un-pad with a single strided slice (no concatenate). Column order [o1|o2|o3]
    # matches torch.cat([...], dim=-1).
    if Lp == L:
        out = out_full[:M]
    else:
        out = out_full[:M].reshape(M, 3, Lp)[:, :, :L].reshape(M, 3 * L)
    return out.reshape(B, C, 3 * L)


def reference_forward(x, params, keep_size=0.5, keep_size2=0.5):
    """Pure-JAX f32 reference mirroring the PyTorch forward (direct formulation)."""
    B, C, L = x.shape
    keep_L = int(L * keep_size)
    keep_C = int(C * keep_size)
    kL2 = int(keep_L * keep_size2)
    kC2 = int(keep_C * keep_size2)
    M = B * C
    W1, b1, W2, b2, W3, b3 = params
    dm = dct_matrix(M)
    dl = dct_matrix(L)

    x_flat = x.reshape(M, L)
    t_flat = dm @ x_flat @ dl.T                 # dct_2d on (B*C, L)
    t = t_flat.reshape(B, C, L)

    y1 = t @ W1.T + b1
    trunc = t[:, :keep_C, :keep_L]
    y2s = trunc @ W2.T + b2
    y2 = jnp.zeros((B, C, L), jnp.float32).at[:, :keep_C, :keep_L].set(y2s)
    trunc2 = t[:, :kC2, :kL2]
    y3s = trunc2 @ W3.T + b3
    y3 = jnp.zeros((B, C, L), jnp.float32).at[:, :kC2, :kL2].set(y3s)

    def idct2d(y):
        yf = y.reshape(M, L)
        return (dm.T @ (yf @ dl)).reshape(B, C, L)

    return jnp.concatenate([idct2d(y1), idct2d(y2), idct2d(y3)], axis=-1)


if __name__ == "__main__":
    # Small shapes consistent with the module defaults (L=96, C=7), small batch.
    B, C, L = 2, 7, 96
    keep_size, keep_size2 = 0.5, 0.5
    keep_L = int(L * keep_size)
    kL2 = int(keep_L * keep_size2)

    key = jax.random.PRNGKey(0)
    kx, k1, k2, k3, k4, k5, k6 = jax.random.split(key, 7)
    x = jax.random.normal(kx, (B, C, L), dtype=jnp.float32)

    # Deterministic synthetic parameters: Linear(L,L), Linear(keep_L,keep_L), Linear(kL2,kL2).
    W1 = jax.random.normal(k1, (L, L), dtype=jnp.float32) * (1.0 / np.sqrt(L))
    b1 = jax.random.normal(k2, (L,), dtype=jnp.float32) * 0.1
    W2 = jax.random.normal(k3, (keep_L, keep_L), dtype=jnp.float32) * (1.0 / np.sqrt(keep_L))
    b2 = jax.random.normal(k4, (keep_L,), dtype=jnp.float32) * 0.1
    W3 = jax.random.normal(k5, (kL2, kL2), dtype=jnp.float32) * (1.0 / np.sqrt(kL2))
    b3 = jax.random.normal(k6, (kL2,), dtype=jnp.float32) * 0.1
    params = (W1, b1, W2, b2, W3, b3)

    # One-time parameter-only precompute (hoisted out of the per-call forward).
    ops = prepare_mwt_operators(params, B, C, L, keep_size=keep_size, keep_size2=keep_size2)
    ops = jax.tree_util.tree_map(jax.block_until_ready, ops)

    out = multiwavelet_transform(x, ops)
    out = jax.block_until_ready(out)

    ref = reference_forward(x, params, keep_size, keep_size2)
    # bf16 MXU operands on the masked branches (branch 1 is f32) -> loosened tolerance.
    np.testing.assert_allclose(np.asarray(out), np.asarray(ref), rtol=3e-2, atol=3e-2)
    assert out.shape == (B, C, 3 * L), out.shape

    print("KERNEL_OK")
</pallas_src>

<mosaic_0001>
module attributes {stable_mosaic.version = 11 : i64} {
  func.func @_mwt_kernel(%arg0: i32, %arg1: memref<16x128xf32, #tpu.memory_space<vmem>>, %arg2: memref<16x16xbf16, #tpu.memory_space<vmem>>, %arg3: memref<16x16xbf16, #tpu.memory_space<vmem>>, %arg4: memref<16x128xbf16, #tpu.memory_space<vmem>>, %arg5: memref<16x128xbf16, #tpu.memory_space<vmem>>, %arg6: memref<16x384xf32, #tpu.memory_space<vmem>>) attributes {dimension_semantics = [#tpu.dimension_semantics<parallel>], iteration_bounds = array<i64: 2>, scalar_prefetch = 0 : i64, scratch_operands = 0 : i64, tpu.core_type = #tpu.core_type<tc>, window_params = [{transform_indices = @transform_0, window_bounds = array<i64: 16, 128>}, {transform_indices = @transform_1, window_bounds = array<i64: 16, 16>}, {transform_indices = @transform_2, window_bounds = array<i64: 16, 16>}, {pipeline_mode = #tpu.pipeline_mode<synchronous>, transform_indices = @transform_3, window_bounds = array<i64: 16, 128>}, {pipeline_mode = #tpu.pipeline_mode<synchronous>, transform_indices = @transform_4, window_bounds = array<i64: 16, 128>}, {transform_indices = @transform_5, window_bounds = array<i64: 16, 384>}]} {
    %c0 = arith.constant 0 : index
    %c0_0 = arith.constant 0 : index
    %0 = vector.load %arg2[%c0, %c0_0] : memref<16x16xbf16, #tpu.memory_space<vmem>>, vector<16x16xbf16>
    %c0_1 = arith.constant 0 : index
    %c0_2 = arith.constant 0 : index
    %1 = vector.load %arg4[%c0_1, %c0_2] : memref<16x128xbf16, #tpu.memory_space<vmem>>, vector<16x128xbf16>
    %cst = arith.constant dense<0.000000e+00> : vector<16x128xf32>
    %2 = tpu.matmul %0, %1, %cst {dimension_numbers = #tpu.dot_dimension_numbers<[1], [0], [0], [1], [0, 0, 1, 1], [], []>} : vector<16x16xbf16>, vector<16x128xbf16>, vector<16x128xf32> -> vector<16x128xf32>
    %c0_3 = arith.constant 0 : index
    %c0_4 = arith.constant 0 : index
    %3 = vector.load %arg3[%c0_3, %c0_4] : memref<16x16xbf16, #tpu.memory_space<vmem>>, vector<16x16xbf16>
    %c0_5 = arith.constant 0 : index
    %c0_6 = arith.constant 0 : index
    %4 = vector.load %arg5[%c0_5, %c0_6] : memref<16x128xbf16, #tpu.memory_space<vmem>>, vector<16x128xbf16>
    %cst_7 = arith.constant dense<0.000000e+00> : vector<16x128xf32>
    %5 = tpu.matmul %3, %4, %cst_7 {dimension_numbers = #tpu.dot_dimension_numbers<[1], [0], [0], [1], [0, 0, 1, 1], [], []>} : vector<16x16xbf16>, vector<16x128xbf16>, vector<16x128xf32> -> vector<16x128xf32>
    %c0_8 = arith.constant 0 : index
    %c0_9 = arith.constant 0 : index
    %6 = vector.load %arg1[%c0_8, %c0_9] : memref<16x128xf32, #tpu.memory_space<vmem>>, vector<16x128xf32>
    %c0_10 = arith.constant 0 : index
    %c0_11 = arith.constant 0 : index
    %7 = vector.load %arg6[%c0_10, %c0_11] : memref<16x384xf32, #tpu.memory_space<vmem>>, vector<16x128xf32>
    tpu.vector_store %arg6[%c0_10, %c0_11], %6 {strides = array<i32>} : memref<16x384xf32, #tpu.memory_space<vmem>>, vector<16x128xf32>,
    %c0_12 = arith.constant 0 : index
    %c128 = arith.constant 128 : index
    %8 = vector.load %arg6[%c0_12, %c128] : memref<16x384xf32, #tpu.memory_space<vmem>>, vector<16x128xf32>
    tpu.vector_store %arg6[%c0_12, %c128], %2 {strides = array<i32>} : memref<16x384xf32, #tpu.memory_space<vmem>>, vector<16x128xf32>,
    %c0_13 = arith.constant 0 : index
    %c256 = arith.constant 256 : index
    %9 = vector.load %arg6[%c0_13, %c256] : memref<16x384xf32, #tpu.memory_space<vmem>>, vector<16x128xf32>
    tpu.vector_store %arg6[%c0_13, %c256], %5 {strides = array<i32>} : memref<16x384xf32, #tpu.memory_space<vmem>>, vector<16x128xf32>,
    return
  }
  func.func @transform_0(%arg0: i32) -> (i32, i32) {
    %c0_i32 = arith.constant 0 : i32
    %c0_i32_0 = arith.constant 0 : i32
    return %arg0, %c0_i32 : i32, i32
  }
  func.func @transform_1(%arg0: i32) -> (i32, i32) {
    %c0_i32 = arith.constant 0 : i32
    %c0_i32_0 = arith.constant 0 : i32
    return %arg0, %c0_i32 : i32, i32
  }
  func.func @transform_2(%arg0: i32) -> (i32, i32) {
    %c0_i32 = arith.constant 0 : i32
    %c0_i32_0 = arith.constant 0 : i32
    return %arg0, %c0_i32 : i32, i32
  }
  func.func @transform_3(%arg0: i32) -> (i32, i32) {
    %c0_i32 = arith.constant 0 : i32
    %c0_i32_0 = arith.constant 0 : i32
    %c0_i32_1 = arith.constant 0 : i32
    return %c0_i32, %c0_i32_0 : i32, i32
  }
  func.func @transform_4(%arg0: i32) -> (i32, i32) {
    %c0_i32 = arith.constant 0 : i32
    %c0_i32_0 = arith.constant 0 : i32
    %c0_i32_1 = arith.constant 0 : i32
    return %c0_i32, %c0_i32_0 : i32, i32
  }
  func.func @transform_5(%arg0: i32) -> (i32, i32) {
    %c0_i32 = arith.constant 0 : i32
    %c0_i32_0 = arith.constant 0 : i32
    return %arg0, %c0_i32 : i32, i32
  }
}

</mosaic_0001>

<llo_original>
// kernel: multiwavelet_transform.1
$region0: #{multiwavelet_transform.1}
  #allocation0 [shape = 'u32[]', space=smem, size = 0x4, offset = 0x4, fixed_abs, tag = 'smem constant byte address 0x4 - core index']
  #allocation1 [shape = 'u32[144,128]{1,0:T(1,128)}', space=vmem, size = 0x12000, scoped, tag = 'internal scratch']
  %s0 = inlined_call_operand.vmem [shape: f32[32,128], index: 0, kind: input, shape index: {}]
  %s1 = inlined_call_operand.vmem [shape: bf16[32,16], index: 1, kind: input, shape index: {}]
  %s2 = inlined_call_operand.vmem [shape: bf16[32,16], index: 2, kind: input, shape index: {}]
  %s3 = inlined_call_operand.vmem [shape: bf16[16,128], index: 3, kind: input, shape index: {}]
  %s4 = inlined_call_operand.vmem [shape: bf16[16,128], index: 4, kind: input, shape index: {}]
  %s5 = inlined_call_operand.vmem [shape: f32[32,384], index: 5, kind: output, shape index: {}]
  %s6 = sld [smem:[#allocation0]]
  $region53: #{multiwavelet_transform.1} parent=0
    _
  %s8 = ssub.s32 1, %s6
  %s9 = scalar_select 0, %s8, %s6
  loop: start=0, step=1, limit=4
  $region2: #{multiwavelet_transform.1} parent=0 // loop_pre_header
    _
  $region3: #{multiwavelet_transform.1} parent=0 // loop_header
    %s11 = sphi 0, %s15
    %p12 = scmp.ge.s32.totalorder %s11, 4
    %s21 = sphi 0, %s23
    %s24 = sphi 0, %s21
    %s25 = sphi 0, %s24
    %s41 = sphi 0, %s25
    %s47 = sphi 0, %s49
    %s50 = sphi 0, %s47
    %s51 = sphi 0, %s50
    %s67 = sphi 0, %s51
    %s73 = sphi 0, %s75
    %s76 = sphi 0, %s73
    %s77 = sphi 0, %s76
    %s93 = sphi 0, %s77
    %s97 = sphi 0, %s97
    %s99 = sphi 0, %s97
    %s100 = sphi 0, %s99
    %s114 = sphi 0, %s100
    %s118 = sphi 0, %s118
    %s120 = sphi 0, %s118
    %s121 = sphi 0, %s120
    %s135 = sphi 0, %s121
    %s141 = sphi 0, %s143
    %s144 = sphi 0, %s141
    %s145 = sphi 0, %s144
    %s161 = sphi 0, %s145
  $region4: #{multiwavelet_transform.1} parent=0 // loop_header_branch
    %14 = sbr.rel (%p12) target = $region8
  $region5: #{multiwavelet_transform.1} parent=0 // loop_body
    %s16 = ssub.s32 %s11, 1
    %s17 = ssub.s32 %s11, 2
    %s18 = sadd.s32 %s11, 1
    %s19 = ssub.s32 %s11, %s18
    %p20 = scmp.eq.s32.totalorder %s19, 0
    %s22 = sadd.s32 %s21, 1
    %s23 = scalar_select %p20, %s21, %s22
    %p26 = pneg %p20
    %p27 = scmp.eq.s32.totalorder %s11, 1
    %p28 = por %p26, %p27
    %p29 = scmp.ne.s32.totalorder %s21, %s24
    %p30 = scmp.eq.s32.totalorder %s11, 0
    %p31 = por %p29, %p30
    %p32 = scmp.ne.s32.totalorder %s21, %s24
    %p33 = scmp.eq.s32.totalorder %s16, 1
    %p34 = por %p32, %p33
    %p35 = scmp.ne.s32.totalorder %s24, %s25
    %p36 = scmp.eq.s32.totalorder %s16, 0
    %p37 = por %p35, %p36
    %p38 = scmp.ne.s32.totalorder %s24, %s25
    %p39 = scmp.eq.s32.totalorder %s17, 1
    %p40 = por %p38, %p39
    %p42 = scmp.ne.s32.totalorder %s25, %s41
    %p43 = scmp.eq.s32.totalorder %s17, 0
    %p44 = por %p42, %p43
    %s45 = ssub.s32 %s11, %s18
    %p46 = scmp.eq.s32.totalorder %s45, 0
    %s48 = sadd.s32 %s47, 1
    %s49 = scalar_select %p46, %s47, %s48
    %p52 = pneg %p46
    %p53 = scmp.eq.s32.totalorder %s11, 1
    %p54 = por %p52, %p53
    %p55 = scmp.ne.s32.totalorder %s47, %s50
    %p56 = scmp.eq.s32.totalorder %s11, 0
    %p57 = por %p55, %p56
    %p58 = scmp.ne.s32.totalorder %s47, %s50
    %p59 = scmp.eq.s32.totalorder %s16, 1
    %p60 = por %p58, %p59
    %p61 = scmp.ne.s32.totalorder %s50, %s51
    %p62 = scmp.eq.s32.totalorder %s16, 0
    %p63 = por %p61, %p62
    %p64 = scmp.ne.s32.totalorder %s50, %s51
    %p65 = scmp.eq.s32.totalorder %s17, 1
    %p66 = por %p64, %p65
    %p68 = scmp.ne.s32.totalorder %s51, %s67
    %p69 = scmp.eq.s32.totalorder %s17, 0
    %p70 = por %p68, %p69
    %s71 = ssub.s32 %s11, %s18
    %p72 = scmp.eq.s32.totalorder %s71, 0
    %s74 = sadd.s32 %s73, 1
    %s75 = scalar_select %p72, %s73, %s74
    %p78 = pneg %p72
    %p79 = scmp.eq.s32.totalorder %s11, 1
    %p80 = por %p78, %p79
    %p81 = scmp.ne.s32.totalorder %s73, %s76
    %p82 = scmp.eq.s32.totalorder %s11, 0
    %p83 = por %p81, %p82
    %p84 = scmp.ne.s32.totalorder %s73, %s76
    %p85 = scmp.eq.s32.totalorder %s16, 1
    %p86 = por %p84, %p85
    %p87 = scmp.ne.s32.totalorder %s76, %s77
    %p88 = scmp.eq.s32.totalorder %s16, 0
    %p89 = por %p87, %p88
    %p90 = scmp.ne.s32.totalorder %s76, %s77
    %p91 = scmp.eq.s32.totalorder %s17, 1
    %p92 = por %p90, %p91
    %p94 = scmp.ne.s32.totalorder %s77, %s93
    %p95 = scmp.eq.s32.totalorder %s17, 0
    %p96 = por %p94, %p95
    %s98 = sadd.s32 %s97, 1
    %p101 = scmp.eq.s32.totalorder %s11, 1
    %p102 = scmp.ne.s32.totalorder %s97, %s99
    %p103 = scmp.eq.s32.totalorder %s11, 0
    %p104 = por %p102, %p103
    %p105 = scmp.ne.s32.totalorder %s97, %s99
    %p106 = scmp.eq.s32.totalorder %s16, 1
    %p107 = por %p105, %p106
    %p108 = scmp.ne.s32.totalorder %s99, %s100
    %p109 = scmp.eq.s32.totalorder %s16, 0
    %p110 = por %p108, %p109
    %p111 = scmp.ne.s32.totalorder %s99, %s100
    %p112 = scmp.eq.s32.totalorder %s17, 1
    %p113 = por %p111, %p112
    %p115 = scmp.ne.s32.totalorder %s100, %s114
    %p116 = scmp.eq.s32.totalorder %s17, 0
    %p117 = por %p115, %p116
    %s119 = sadd.s32 %s118, 1
    %p122 = scmp.eq.s32.totalorder %s11, 1
    %p123 = scmp.ne.s32.totalorder %s118, %s120
    %p124 = scmp.eq.s32.totalorder %s11, 0
    %p125 = por %p123, %p124
    %p126 = scmp.ne.s32.totalorder %s118, %s120
    %p127 = scmp.eq.s32.totalorder %s16, 1
    %p128 = por %p126, %p127
    %p129 = scmp.ne.s32.totalorder %s120, %s121
    %p130 = scmp.eq.s32.totalorder %s16, 0
    %p131 = por %p129, %p130
    %p132 = scmp.ne.s32.totalorder %s120, %s121
    %p133 = scmp.eq.s32.totalorder %s17, 1
    %p134 = por %p132, %p133
    %p136 = scmp.ne.s32.totalorder %s121, %s135
    %p137 = scmp.eq.s32.totalorder %s17, 0
    %p138 = por %p136, %p137
    %s139 = ssub.s32 %s11, %s18
    %p140 = scmp.eq.s32.totalorder %s139, 0
    %s142 = sadd.s32 %s141, 1
    %s143 = scalar_select %p140, %s141, %s142
    %p146 = pneg %p140
    %p147 = scmp.eq.s32.totalorder %s11, 1
    %p148 = por %p146, %p147
    %p149 = scmp.ne.s32.totalorder %s141, %s144
    %p150 = scmp.eq.s32.totalorder %s11, 0
    %p151 = por %p149, %p150
    %p152 = scmp.ne.s32.totalorder %s141, %s144
    %p153 = scmp.eq.s32.totalorder %s16, 1
    %p154 = por %p152, %p153
    %p155 = scmp.ne.s32.totalorder %s144, %s145
    %p156 = scmp.eq.s32.totalorder %s16, 0
    %p157 = por %p155, %p156
    %p158 = scmp.ne.s32.totalorder %s144, %s145
    %p159 = scmp.eq.s32.totalorder %s17, 1
    %p160 = por %p158, %p159
    %p162 = scmp.ne.s32.totalorder %s145, %s161
    %p163 = scmp.eq.s32.totalorder %s17, 0
    %p164 = por %p162, %p163
    %p165 = scmp.le.s32.totalorder 1, %s11
    %p166 = scmp.lt.s32.totalorder %s11, 3
    %p167 = pnand %p165, %p166
    %p168 = pneg %p167
    // Predicated region
    $region9: #{multiwavelet_transform.1} parent=5 // pred_check
      _
    $region10: #{multiwavelet_transform.1} parent=5 // pred_check_branch
      %170 = sbr.rel (%p167) target = $region12
    $region11: #{multiwavelet_transform.1} parent=5 // pred_region
      %s171 = ssub.s32 %s11, 1
      // Predicated region
      $region13: #{multiwavelet_transform.1} parent=11 // pred_check
        %p172 = pneg %p110
      $region14: #{multiwavelet_transform.1} parent=11 // pred_check_branch
        %174 = sbr.rel (%p172) target = $region16
      $region15: #{multiwavelet_transform.1} parent=11 // pred_region
        _
      $region16: #{multiwavelet_transform.1} parent=11 // pred_fallthru
        _
      // Predicated region
      $region17: #{multiwavelet_transform.1} parent=11 // pred_check
        %p175 = pneg %p131
      $region18: #{multiwavelet_transform.1} parent=11 // pred_check_branch
        %177 = sbr.rel (%p175) target = $region20
      $region19: #{multiwavelet_transform.1} parent=11 // pred_region
        _
      $region20: #{multiwavelet_transform.1} parent=11 // pred_fallthru
        _
    $region12: #{multiwavelet_transform.1} parent=5 // pred_fallthru
      _
    %p178 = scmp.lt.s32.totalorder %s11, 2
    // Predicated region
    $region21: #{multiwavelet_transform.1} parent=5 // pred_check
      %p179 = pneg %p178
    $region22: #{multiwavelet_transform.1} parent=5 // pred_check_branch
      %181 = sbr.rel (%p179) target = $region24
    $region23: #{multiwavelet_transform.1} parent=5 // pred_region
      // Predicated region
      $region25: #{multiwavelet_transform.1} parent=23 // pred_check
        %p182 = pneg %p31
      $region26: #{multiwavelet_transform.1} parent=23 // pred_check_branch
        %184 = sbr.rel (%p182) target = $region28
      $region27: #{multiwavelet_transform.1} parent=23 // pred_region
        %s185 = smul.u32 2, %s11
        %p186 = scmp.lt.s32.totalorder %s185, 3
        %s187 = scalar_select %p186, %s185, 3
        %s188 = smul.addr %s187, 8
        %s189 = scalar_lea.vmem %s0, %s188
        %s190 = smul.u32 2, %s11
      $region28: #{multiwavelet_transform.1} parent=23 // pred_fallthru
        _
      // Predicated region
      $region29: #{multiwavelet_transform.1} parent=23 // pred_check
        %p191 = pneg %p57
      $region30: #{multiwavelet_transform.1} parent=23 // pred_check_branch
        %193 = sbr.rel (%p191) target = $region32
      $region31: #{multiwavelet_transform.1} parent=23 // pred_region
        %s194 = smul.u32 2, %s11
        %p195 = scmp.lt.s32.totalorder %s194, 3
        %s196 = scalar_select %p195, %s194, 3
        %s197 = smul.addr %s196, 4
        %s198 = scalar_lea.vmem %s1, %s197
        %s199 = smul.u32 2, %s11
      $region32: #{multiwavelet_transform.1} parent=23 // pred_fallthru
        _
      // Predicated region
      $region33: #{multiwavelet_transform.1} parent=23 // pred_check
        %p200 = pneg %p83
      $region34: #{multiwavelet_transform.1} parent=23 // pred_check_branch
        %202 = sbr.rel (%p200) target = $region36
      $region35: #{multiwavelet_transform.1} parent=23 // pred_region
        %s203 = smul.u32 2, %s11
        %p204 = scmp.lt.s32.totalorder %s203, 3
        %s205 = scalar_select %p204, %s203, 3
        %s206 = smul.addr %s205, 4
        %s207 = scalar_lea.vmem %s2, %s206
        %s208 = smul.u32 2, %s11
      $region36: #{multiwavelet_transform.1} parent=23 // pred_fallthru
        _
    $region24: #{multiwavelet_transform.1} parent=5 // pred_fallthru
      _
    %p209 = scmp.le.s32.totalorder 1, %s11
    %p210 = scmp.lt.s32.totalorder %s11, 3
    %p211 = pnand %p209, %p210
    %p212 = pneg %p211
    // Predicated region
    $region37: #{multiwavelet_transform.1} parent=5 // pred_check
      _
    $region38: #{multiwavelet_transform.1} parent=5 // pred_check_branch
      %214 = sbr.rel (%p211) target = $region40
    $region39: #{multiwavelet_transform.1} parent=5 // pred_region
      %s215 = ssub.s32 %s11, 1
      %s216 = smul.u32 2, %s16
      %p217 = scmp.lt.s32.totalorder %s216, 3
      %s218 = scalar_select %p217, %s216, 3
      %s219 = smul.addr %s218, 8
      %s220 = scalar_lea.vmem %s0, %s219
      %p221 = pneg %p37
      %p222 = pneg %p34
      %s223 = smul.u32 2, %s16
      %p224 = scmp.lt.s32.totalorder %s223, 3
      %s225 = scalar_select %p224, %s223, 3
      %s226 = smul.addr %s225, 4
      %s227 = scalar_lea.vmem %s1, %s226
      %p228 = pneg %p63
      %p229 = pneg %p60
      %s230 = smul.u32 2, %s16
      %p231 = scmp.lt.s32.totalorder %s230, 3
      %s232 = scalar_select %p231, %s230, 3
      %s233 = smul.addr %s232, 4
      %s234 = scalar_lea.vmem %s2, %s233
      %p235 = pneg %p89
      %p236 = pneg %p86
      %p237 = pneg %p110
      %p238 = pneg %p107
      %p239 = pneg %p131
      %p240 = pneg %p128
      %p241 = pneg %p157
      %p242 = pneg %p154
      %s243 = smul.u32 2, %s16
      %p244 = scmp.lt.s32.totalorder %s243, 3
      %s245 = scalar_select %p244, %s243, 3
      %s246 = smul.addr %s245, 3
      %s247 = smul.addr %s246, 8
      %s248 = scalar_lea.vmem %s5, %s247
      %s249 = smul.u32 2, %s16
      %p250 = scmp.lt.s32.totalorder %s249, 3
      %s251 = scalar_select %p250, %s249, 3
      %s252 = smul.addr %s251, 8
      %s253 = scalar_lea.vmem %s0, %s252
      %s254 = smul.u32 2, %s16
      %s255 = smul.u32 2, %s16
      %p256 = scmp.lt.s32.totalorder %s255, 3
      %s257 = scalar_select %p256, %s255, 3
      %s258 = smul.addr %s257, 4
      %s259 = scalar_lea.vmem %s1, %s258
      %s260 = smul.u32 2, %s16
      %s261 = smul.u32 2, %s16
      %p262 = scmp.lt.s32.totalorder %s261, 3
      %s263 = scalar_select %p262, %s261, 3
      %s264 = smul.addr %s263, 4
      %s265 = scalar_lea.vmem %s2, %s264
      %s266 = smul.u32 2, %s16
      %s267 = smul.u32 2, %s16
      %p268 = scmp.lt.s32.totalorder %s267, 3
      %s269 = scalar_select %p268, %s267, 3
      %s270 = smul.addr %s269, 3
      %s271 = smul.addr %s270, 8
      %s272 = scalar_lea.vmem %s5, %s271
      %s273 = smul.u32 2, %s16
      %v275 = vld [vmem:[%s259] sm:$0xf]
      %v276 = vld [vmem:[%s259 + $0x4] sm:$0xf]
      %v277 = vld [vmem:[%s3] sm:$0xf]
      %v278 = vld [vmem:[%s3 + $0x4] sm:$0xf]
      %v281 = vunpack.c.l.b16 %v275
      %v282 = vunpack.c.l.b16 %v276
      %v283 = vpack.c.b16 %v282, %v281
      %v286 = vunpack.c.l.b16 %v277
      %v287 = vunpack.c.l.b16 %v278
      %v288 = vpack.c.b16 %v287, %v286
      %vm290 = vcmask 130048
      %v292 = vsel %vm290, %v283, 0
      %294 = vmatprep.subr.bf16.mxu0 0
      %295 = vmatpush1.bf16.msra.mxu0 0
      %296 = vmatprep.subr.bf16.mxu0 0
      %297 = vmatpush1.bf16.msra.mxu0 0
      %298 = vmatprep.subr.bf16.mxu0 0
      %299 = vmatpush1.bf16.msra.mxu0 0
      %300 = vmatprep.subr.bf16.mxu0 0
      %301 = vmatpush1.bf16.msra.mxu0 0
      %302 = vmatprep.subr.bf16.mxu0 0
      %303 = vmatpush1.bf16.msra.mxu0 0
      %304 = vmatprep.subr.bf16.mxu0 0
      %305 = vmatpush1.bf16.msra.mxu0 0
      %306 = vmatprep.subr.bf16.mxu0 0
      %307 = vmatpush1.bf16.msra.mxu0 0
      %308 = vmatprep.subr.bf16.mxu0 0
      %309 = vmatpush1.bf16.msra.mxu0 %v288
      %310 = vmatprep.subr.bf16.mxu0 0
      %311 = vmatpush2.bf16.msra.mxu0 0
      %312 = vmatprep.subr.bf16.mxu0 0
      %313 = vmatpush2.bf16.msra.mxu0 0
      %314 = vmatprep.subr.bf16.mxu0 0
      %315 = vmatpush2.bf16.msra.mxu0 0
      %316 = vmatprep.subr.bf16.mxu0 0
      %317 = vmatpush2.bf16.msra.mxu0 0
      %318 = vmatprep.subr.bf16.mxu0 0
      %319 = vmatpush2.bf16.msra.mxu0 0
      %320 = vmatprep.subr.bf16.mxu0 0
      %321 = vmatpush2.bf16.msra.mxu0 0
      %322 = vmatprep.subr.bf16.mxu0 0
      %323 = vmatpush2.bf16.msra.mxu0 0
      %324 = vmatprep.subr.bf16.mxu0 0
      %325 = vmatpush2.bf16.msra.mxu0 0
      %326 = vmatprep.mubr.bf16.mxu0 0
      %327 = vmatmul.mubr.bf16.gmra.mxu0 %v292
      %v328 = vpop.f32.mrf.mxu0
      %v329 = vadd.f32 0.0, %v328
      %v330 = vpop.f32.mrf.mxu0
      %v331 = vpop.f32.mrf.mxu0
      %v332 = vadd.f32 0.0, %v331
      %v333 = vpop.f32.mrf.mxu0
      %334 = vdwg.mxu0
      %v335 = vld [vmem:[%s265] sm:$0xf]
      %v336 = vld [vmem:[%s265 + $0x4] sm:$0xf]
      %v337 = vld [vmem:[%s4] sm:$0xf]
      %v338 = vld [vmem:[%s4 + $0x4] sm:$0xf]
      %v341 = vunpack.c.l.b16 %v335
      %v342 = vunpack.c.l.b16 %v336
      %v343 = vpack.c.b16 %v342, %v341
      %v346 = vunpack.c.l.b16 %v337
      %v347 = vunpack.c.l.b16 %v338
      %v348 = vpack.c.b16 %v347, %v346
      %v351 = vsel %vm290, %v343, 0
      %353 = vmatprep.subr.bf16.mxu0 0
      %354 = vmatpush1.bf16.msra.mxu0 0
      %355 = vmatprep.subr.bf16.mxu0 0
      %356 = vmatpush1.bf16.msra.mxu0 0
      %357 = vmatprep.subr.bf16.mxu0 0
      %358 = vmatpush1.bf16.msra.mxu0 0
      %359 = vmatprep.subr.bf16.mxu0 0
      %360 = vmatpush1.bf16.msra.mxu0 0
      %361 = vmatprep.subr.bf16.mxu0 0
      %362 = vmatpush1.bf16.msra.mxu0 0
      %363 = vmatprep.subr.bf16.mxu0 0
      %364 = vmatpush1.bf16.msra.mxu0 0
      %365 = vmatprep.subr.bf16.mxu0 0
      %366 = vmatpush1.bf16.msra.mxu0 0
      %367 = vmatprep.subr.bf16.mxu0 0
      %368 = vmatpush1.bf16.msra.mxu0 %v348
      %369 = vmatprep.subr.bf16.mxu0 0
      %370 = vmatpush2.bf16.msra.mxu0 0
      %371 = vmatprep.subr.bf16.mxu0 0
      %372 = vmatpush2.bf16.msra.mxu0 0
      %373 = vmatprep.subr.bf16.mxu0 0
      %374 = vmatpush2.bf16.msra.mxu0 0
      %375 = vmatprep.subr.bf16.mxu0 0
      %376 = vmatpush2.bf16.msra.mxu0 0
      %377 = vmatprep.subr.bf16.mxu0 0
      %378 = vmatpush2.bf16.msra.mxu0 0
      %379 = vmatprep.subr.bf16.mxu0 0
      %380 = vmatpush2.bf16.msra.mxu0 0
      %381 = vmatprep.subr.bf16.mxu0 0
      %382 = vmatpush2.bf16.msra.mxu0 0
      %383 = vmatprep.subr.bf16.mxu0 0
      %384 = vmatpush2.bf16.msra.mxu0 0
      %385 = vmatprep.mubr.bf16.mxu0 0
      %386 = vmatmul.mubr.bf16.gmra.mxu0 %v351
      %v387 = vpop.f32.mrf.mxu0
      %v388 = vadd.f32 0.0, %v387
      %v389 = vpop.f32.mrf.mxu0
      %v390 = vpop.f32.mrf.mxu0
      %v391 = vadd.f32 0.0, %v390
      %v392 = vpop.f32.mrf.mxu0
      %393 = vdwg.mxu0
      %v394 = vld [vmem:[%s253] sm:$0xff]
      %v395 = vld [vmem:[%s253 + $0x8] sm:$0xff]
      %396 = vst [vmem:[%s272] sm:$0xff] %v394
      %397 = vst [vmem:[%s272 + $0x18] sm:$0xff] %v395
      %398 = vst [vmem:[%s272 + $0x8] sm:$0xff] %v329
      %399 = vst [vmem:[%s272 + $0x20] sm:$0xff] %v332
      %400 = vst [vmem:[%s272 + $0x10] sm:$0xff] %v388
      %401 = vst [vmem:[%s272 + $0x28] sm:$0xff] %v391
      %s402 = smul.u32 2, %s16
      %p403 = scmp.lt.s32.totalorder %s402, 3
      %s404 = scalar_select %p403, %s402, 3
      %s405 = smul.addr %s404, 3
      %s406 = smul.addr %s405, 8
      %s407 = scalar_lea.vmem %s5, %s406
      // Predicated region
      $region41: #{multiwavelet_transform.1} parent=39 // pred_check
        %p408 = pneg %p154
      $region42: #{multiwavelet_transform.1} parent=39 // pred_check_branch
        %410 = sbr.rel (%p408) target = $region44
      $region43: #{multiwavelet_transform.1} parent=39 // pred_region
        %s411 = smul.u32 2, %s16
      $region44: #{multiwavelet_transform.1} parent=39 // pred_fallthru
        _
    $region40: #{multiwavelet_transform.1} parent=5 // pred_fallthru
      _
    %p412 = scmp.le.s32.totalorder 2, %s11
    // Predicated region
    $region45: #{multiwavelet_transform.1} parent=5 // pred_check
      %p413 = pneg %p412
    $region46: #{multiwavelet_transform.1} parent=5 // pred_check_branch
      %415 = sbr.rel (%p413) target = $region48
    $region47: #{multiwavelet_transform.1} parent=5 // pred_region
      %s416 = ssub.s32 %s11, 2
      // Predicated region
      $region49: #{multiwavelet_transform.1} parent=47 // pred_check
        %p417 = pneg %p160
      $region50: #{multiwavelet_transform.1} parent=47 // pred_check_branch
        %419 = sbr.rel (%p417) target = $region52
      $region51: #{multiwavelet_transform.1} parent=47 // pred_region
        %s420 = smul.u32 2, %s17
        %p421 = scmp.lt.s32.totalorder %s420, 3
        %s422 = scalar_select %p421, %s420, 3
        %s423 = smul.addr %s422, 3
        %s424 = smul.addr %s423, 8
        %s425 = scalar_lea.vmem %s5, %s424
      $region52: #{multiwavelet_transform.1} parent=47 // pred_fallthru
        _
    $region48: #{multiwavelet_transform.1} parent=5 // pred_fallthru
      _
  $region6: #{multiwavelet_transform.1} parent=0 // loop_footer
    %s15 = sadd.s32 1, %s11
  $region7: #{multiwavelet_transform.1} parent=0 // loop_footer_branch
    %10 = sbr.rel target = $region3
  $region8: #{multiwavelet_transform.1} parent=0 // loop_exit
    _

</llo_original>
